<compile_context>
chip_gen: v7x
topology: tpu7x:2x2x1
jax: 0.10.0
libtpu: 0.0.40
codegen_flags: <defaults>
</compile_context>

<pallas_src>
import functools

import jax
import jax.numpy as jnp
from jax.experimental import pallas as pl
from jax.experimental.pallas import tpu as pltpu

LANES = 128


def _per_sample_sum(t):
    """t: (Bb, R, L) -> (Bb, 1, 1) per-sample sums, lane-dense.

    Folds rows in groups of 8 first (pure VALU adds into an (8, L) one-vreg
    accumulator per sample), then a single XLU reduce of that slab -- avoids
    the sparse (R, 1)-column reduction path for large R.
    """
    Bb, R, L = t.shape
    if R % 8 == 0 and R > 8:
        t = jnp.sum(t.reshape(Bb, R // 8, 8, L), axis=1)     # (Bb, 8, L)
    return jnp.sum(t, axis=(-2, -1), keepdims=True)          # (Bb, 1, 1)


def _layernorm_conv2d_kernel(x_ref, g_ref, b_ref, o_ref, *, eps, n_elems, padded):
    # x_ref block: (Bb, R, 128) -- Bb whole samples, lane/sublane-dense rows.
    # g_ref/b_ref: (R, 1) when each row belongs to one channel, else (R, 128)
    #              per-element maps; both broadcast identically below.
    x = x_ref[...].astype(jnp.float32)                       # (Bb, R, L)
    _, R, L = x.shape

    # Pass 1: per-sample mean.  Tail padding (if any) is zero so it does not
    # perturb the sum; only the divisor uses the true element count.
    mean = _per_sample_sum(x) * (1.0 / n_elems)               # (Bb, 1, 1)

    # Pass 2: unbiased (ddof=1) variance about the mean.  Two-pass form keeps
    # full precision (no E[x^2]-mean^2 cancellation); the tile is already
    # VMEM-resident so this costs no extra HBM traffic.
    d = x - mean
    if padded:
        # Flat indices >= n_elems are zero padding: exclude from the variance.
        rid = jax.lax.broadcasted_iota(jnp.int32, (R, L), 0)
        lid = jax.lax.broadcasted_iota(jnp.int32, (R, L), 1)
        valid = ((rid * L + lid) < n_elems).astype(jnp.float32)   # (R, L)
        d = d * valid
    denom = float(n_elems - 1) if n_elems > 1 else 1.0
    var = _per_sample_sum(d * d) * (1.0 / denom)              # (Bb, 1, 1)
    std = jnp.sqrt(var)

    # Fused normalize + affine:
    #   y = gamma*(x - mean)/(std + eps) + beta = x*scale + shift
    # One EUP reciprocal (+ one Newton step on the tiny (Bb,1,1) tensor)
    # replaces the full-tile vector divide; the big tile only sees a single
    # broadcasted mul+add.
    r = std + eps                                             # (Bb, 1, 1)
    inv = pl.reciprocal(r, approx=True)                       # EUP slot
    inv = inv * (2.0 - r * inv)                               # Newton refine
    scale = g_ref[...] * inv                                  # (Bb, R, 1|L)
    shift = b_ref[...] - mean * scale                         # (Bb, R, 1|L)
    o_ref[...] = (x * scale + shift).astype(o_ref.dtype)


def _choose_block_batch(B, sample_bytes, target_bytes=2 << 20):
    """Largest divisor Bb of B with Bb*sample_bytes <= target_bytes, while
    keeping the grid length B//Bb >= 2 whenever B >= 2 (so v7x's two
    TensorCores both get work via the 'parallel' axis)."""
    best = 1
    for bb in range(1, B + 1):
        if B % bb:
            continue
        if B >= 2 and (B // bb) < 2:
            continue
        if bb * sample_bytes <= target_bytes:
            best = bb
    return best


def layernorm_conv2d(x, gamma, beta, eps=1e-5):
    """x: (B, C, H, W); gamma, beta: (C,). Returns (B, C, H, W)."""
    B, C, H, W = x.shape
    HW = H * W
    n_elems = C * HW

    # Lane-dense per-sample layout: flatten each sample to (rows, 128), zero
    # padding the tail when C*H*W is not a multiple of 128.
    rows = pl.cdiv(n_elems, LANES)
    pad = rows * LANES - n_elems
    padded = pad > 0

    xf = x.reshape(B, n_elems)
    if padded:
        xf = jnp.pad(xf, ((0, 0), (0, pad)))
    x2 = xf.reshape(B, rows, LANES)

    gamma = gamma.astype(jnp.float32)
    beta = beta.astype(jnp.float32)
    if HW % LANES == 0:
        # Each 128-lane row belongs to exactly one channel -> tiny per-row
        # (rows, 1) affine vectors; broadcasted FMA in the kernel.
        rows_per_ch = HW // LANES
        g2 = jnp.repeat(gamma, rows_per_ch).reshape(rows, 1)
        b2 = jnp.repeat(beta, rows_per_ch).reshape(rows, 1)
    else:
        # Rows straddle channel boundaries -> per-element (rows, 128) maps keep
        # the affine a plain elementwise FMA (no masked/strided access).
        gmap = jnp.repeat(gamma, HW)
        bmap = jnp.repeat(beta, HW)
        if padded:
            gmap = jnp.pad(gmap, (0, pad))
            bmap = jnp.pad(bmap, (0, pad))
        g2 = gmap.reshape(rows, LANES)
        b2 = bmap.reshape(rows, LANES)
    gcols = g2.shape[1]

    # Batch Bb samples per grid step to amortize the ~0.35 us per-step pipeline
    # overhead, while keeping >= 2 grid steps when B >= 2 for v7x megacore.
    sample_bytes = rows * LANES * x.dtype.itemsize
    Bb = _choose_block_batch(B, sample_bytes)
    grid_len = B // Bb

    # Scoped-VMEM limit sized from the actual footprint:
    #   double-buffered input + output blocks, resident (double-buffered)
    #   affine params, and the in-kernel f32 working copies (x, d, result),
    #   with 2x slack -- not a fraction of physical capacity.
    block_bytes = Bb * sample_bytes
    param_bytes = (g2.size + b2.size) * 4
    f32_tmp = 3 * Bb * rows * LANES * 4
    need = 2 * (block_bytes + block_bytes) + 2 * param_bytes + f32_tmp
    vmem_limit = int(min(max(2 * need, 4 << 20), 96 << 20))

    kernel = functools.partial(
        _layernorm_conv2d_kernel, eps=eps, n_elems=n_elems, padded=padded
    )

    out = pl.pallas_call(
        kernel,
        out_shape=jax.ShapeDtypeStruct((B, rows, LANES), x.dtype),
        grid_spec=pltpu.PrefetchScalarGridSpec(
            num_scalar_prefetch=0,
            grid=(grid_len,),
            in_specs=[
                pl.BlockSpec((Bb, rows, LANES), lambda i: (i, 0, 0)),
                pl.BlockSpec((rows, gcols), lambda i: (0, 0)),
                pl.BlockSpec((rows, gcols), lambda i: (0, 0)),
            ],
            out_specs=pl.BlockSpec((Bb, rows, LANES), lambda i: (i, 0, 0)),
        ),
        compiler_params=pltpu.CompilerParams(
            dimension_semantics=("parallel",),
            vmem_limit_bytes=vmem_limit,
        ),
    )(x2, g2, b2)

    out = out.reshape(B, rows * LANES)
    if padded:
        out = out[:, :n_elems]
    return out.reshape(B, C, H, W)


def _reference(x, gamma, beta, eps=1e-5):
    B = x.shape[0]
    flat = x.reshape(B, -1).astype(jnp.float32)
    mean = flat.mean(axis=1).reshape(B, 1, 1, 1)
    std = jnp.sqrt(flat.var(axis=1, ddof=1)).reshape(B, 1, 1, 1)
    y = (x - mean) / (std + eps)
    return gamma.reshape(1, -1, 1, 1) * y + beta.reshape(1, -1, 1, 1)


if __name__ == "__main__":
    key = jax.random.PRNGKey(0)
    kx, kg = jax.random.split(key)

    B, C, H, W = 2, 4, 16, 16
    x = jax.random.normal(kx, (B, C, H, W), dtype=jnp.float32)

    # Parameters as in __init__: gamma ~ U(0,1), beta = zeros (affine=True)
    gamma = jax.random.uniform(kg, (C,), dtype=jnp.float32)
    beta = jnp.zeros((C,), dtype=jnp.float32)

    out = layernorm_conv2d(x, gamma, beta, eps=1e-5)
    out = jax.block_until_ready(out)

    ref = _reference(x, gamma, beta, eps=1e-5)
    # Tolerance allows for the approximate (Newton-refined) EUP reciprocal.
    assert jnp.allclose(out, ref, atol=1e-3, rtol=1e-3)

    # Also exercise the non-128-multiple spatial fallback (padded, per-element
    # gamma/beta map) at a small 7x7-style shape.
    x3 = jax.random.normal(kx, (2, 3, 7, 7), dtype=jnp.float32)
    g3 = jax.random.uniform(kg, (3,), dtype=jnp.float32)
    b3 = jnp.zeros((3,), dtype=jnp.float32)
    out3 = jax.block_until_ready(layernorm_conv2d(x3, g3, b3, eps=1e-5))
    assert jnp.allclose(out3, _reference(x3, g3, b3, eps=1e-5), atol=1e-3, rtol=1e-3)

    print("KERNEL_OK")
</pallas_src>

<mosaic_0001>
module attributes {stable_mosaic.version = 11 : i64} {
  func.func @_layernorm_conv2d_kernel(%arg0: i32, %arg1: memref<1x8x128xf32, #tpu.memory_space<vmem>>, %arg2: memref<8x1xf32, #tpu.memory_space<vmem>>, %arg3: memref<8x1xf32, #tpu.memory_space<vmem>>, %arg4: memref<1x8x128xf32, #tpu.memory_space<vmem>>) attributes {dimension_semantics = [#tpu.dimension_semantics<parallel>], iteration_bounds = array<i64: 2>, scalar_prefetch = 0 : i64, scratch_operands = 0 : i64, tpu.core_type = #tpu.core_type<tc>, window_params = [{transform_indices = @transform_0, window_bounds = array<i64: 1, 8, 128>}, {pipeline_mode = #tpu.pipeline_mode<synchronous>, transform_indices = @transform_1, window_bounds = array<i64: 8, 1>}, {pipeline_mode = #tpu.pipeline_mode<synchronous>, transform_indices = @transform_2, window_bounds = array<i64: 8, 1>}, {transform_indices = @transform_3, window_bounds = array<i64: 1, 8, 128>}]} {
    %c0 = arith.constant 0 : index
    %c0_0 = arith.constant 0 : index
    %c0_1 = arith.constant 0 : index
    %0 = vector.load %arg1[%c0, %c0_0, %c0_1] : memref<1x8x128xf32, #tpu.memory_space<vmem>>, vector<1x8x128xf32>
    %cst = arith.constant dense<0.000000e+00> : vector<1xf32>
    %1 = vector.multi_reduction <add>, %0, %cst [1, 2] : vector<1x8x128xf32> to vector<1xf32>
    %2 = vector.shape_cast %1 : vector<1xf32> to vector<1x1x1xf32>
    %cst_2 = arith.constant 9.765625E-4 : f32
    %3 = vector.broadcast %cst_2 : f32 to vector<1x1x1xf32>
    %4 = arith.mulf %2, %3 : vector<1x1x1xf32>
    %5 = vector.broadcast %4 : vector<1x1x1xf32> to vector<1x8x128xf32>
    %6 = arith.subf %0, %5 : vector<1x8x128xf32>
    %7 = arith.mulf %6, %6 : vector<1x8x128xf32>
    %cst_3 = arith.constant dense<0.000000e+00> : vector<1xf32>
    %8 = vector.multi_reduction <add>, %7, %cst_3 [1, 2] : vector<1x8x128xf32> to vector<1xf32>
    %9 = vector.shape_cast %8 : vector<1xf32> to vector<1x1x1xf32>
    %cst_4 = arith.constant 9.77517105E-4 : f32
    %10 = vector.broadcast %cst_4 : f32 to vector<1x1x1xf32>
    %11 = arith.mulf %9, %10 : vector<1x1x1xf32>
    %12 = math.sqrt %11 : vector<1x1x1xf32>
    %cst_5 = arith.constant 9.99999974E-6 : f32
    %13 = vector.broadcast %cst_5 : f32 to vector<1x1x1xf32>
    %14 = arith.addf %12, %13 : vector<1x1x1xf32>
    %15 = tpu.reciprocal %14 {approx = true} : vector<1x1x1xf32> -> vector<1x1x1xf32>
    %16 = arith.mulf %14, %15 : vector<1x1x1xf32>
    %cst_6 = arith.constant 2.000000e+00 : f32
    %17 = vector.broadcast %cst_6 : f32 to vector<1x1x1xf32>
    %18 = arith.subf %17, %16 : vector<1x1x1xf32>
    %19 = arith.mulf %15, %18 : vector<1x1x1xf32>
    %c0_7 = arith.constant 0 : index
    %c0_8 = arith.constant 0 : index
    %20 = vector.load %arg2[%c0_7, %c0_8] : memref<8x1xf32, #tpu.memory_space<vmem>>, vector<8x1xf32>
    %21 = vector.shape_cast %20 : vector<8x1xf32> to vector<1x8x1xf32>
    %22 = vector.broadcast %19 : vector<1x1x1xf32> to vector<1x8x1xf32>
    %23 = arith.mulf %21, %22 : vector<1x8x1xf32>
    %c0_9 = arith.constant 0 : index
    %c0_10 = arith.constant 0 : index
    %24 = vector.load %arg3[%c0_9, %c0_10] : memref<8x1xf32, #tpu.memory_space<vmem>>, vector<8x1xf32>
    %25 = vector.broadcast %4 : vector<1x1x1xf32> to vector<1x8x1xf32>
    %26 = arith.mulf %25, %23 : vector<1x8x1xf32>
    %27 = vector.shape_cast %24 : vector<8x1xf32> to vector<1x8x1xf32>
    %28 = arith.subf %27, %26 : vector<1x8x1xf32>
    %29 = vector.broadcast %23 : vector<1x8x1xf32> to vector<1x8x128xf32>
    %30 = arith.mulf %0, %29 : vector<1x8x128xf32>
    %31 = vector.broadcast %28 : vector<1x8x1xf32> to vector<1x8x128xf32>
    %32 = arith.addf %30, %31 : vector<1x8x128xf32>
    %c0_11 = arith.constant 0 : index
    %c0_12 = arith.constant 0 : index
    %c0_13 = arith.constant 0 : index
    %33 = vector.load %arg4[%c0_11, %c0_12, %c0_13] : memref<1x8x128xf32, #tpu.memory_space<vmem>>, vector<1x8x128xf32>
    tpu.vector_store %arg4[%c0_11, %c0_12, %c0_13], %32 {strides = array<i32>} : memref<1x8x128xf32, #tpu.memory_space<vmem>>, vector<1x8x128xf32>,
    return
  }
  func.func @transform_0(%arg0: i32) -> (i32, i32, i32) {
    %c0_i32 = arith.constant 0 : i32
    %c0_i32_0 = arith.constant 0 : i32
    %c0_i32_1 = arith.constant 0 : i32
    return %arg0, %c0_i32, %c0_i32_0 : i32, i32, i32
  }
  func.func @transform_1(%arg0: i32) -> (i32, i32) {
    %c0_i32 = arith.constant 0 : i32
    %c0_i32_0 = arith.constant 0 : i32
    %c0_i32_1 = arith.constant 0 : i32
    return %c0_i32, %c0_i32_0 : i32, i32
  }
  func.func @transform_2(%arg0: i32) -> (i32, i32) {
    %c0_i32 = arith.constant 0 : i32
    %c0_i32_0 = arith.constant 0 : i32
    %c0_i32_1 = arith.constant 0 : i32
    return %c0_i32, %c0_i32_0 : i32, i32
  }
  func.func @transform_3(%arg0: i32) -> (i32, i32, i32) {
    %c0_i32 = arith.constant 0 : i32
    %c0_i32_0 = arith.constant 0 : i32
    %c0_i32_1 = arith.constant 0 : i32
    return %arg0, %c0_i32, %c0_i32_0 : i32, i32, i32
  }
}

</mosaic_0001>

<llo_original>
// kernel: tpu_custom_call.1
$region0: #{tpu_custom_call.1}
  #allocation0 [shape = 'u32[]', space=smem, size = 0x4, offset = 0x4, fixed_abs, tag = 'smem constant byte address 0x4 - core index']
  #allocation1 [shape = 'u32[144,128]{1,0:T(1,128)}', space=vmem, size = 0x12000, scoped, tag = 'internal scratch']
  %s0 = inlined_call_operand.vmem [shape: f32[2,8,128], index: 0, kind: input, shape index: {}]
  %s1 = inlined_call_operand.vmem [shape: f32[8,1], index: 1, kind: input, shape index: {}]
  %s2 = inlined_call_operand.vmem [shape: f32[8,1], index: 2, kind: input, shape index: {}]
  %s3 = inlined_call_operand.hbm [shape: f32[2,8,128], index: 3, kind: output, shape index: {}]
  %s4 = sld [smem:[#allocation0]]
  $region45: #{tpu_custom_call.1} parent=0
    _
  %s6 = ssub.s32 1, %s4
  %s7 = scalar_select 0, %s6, %s4
  $region1: #{tpu_custom_call.1} parent=0
    #allocation2 [shape = 'u8[8192]{0}', space=vmem, size = 0x2000, scoped, tag = 'output window, operand 0']
    #allocation3 [shape = 's32[2]{0}', space=sflag, size = 0x8, scoped, tag = 'scoped memory for tpu_custom_call.1']
    %8 = vsyncpa [#allocation3], 0
    %s9 = scalar_lea.sflag [#allocation3], 1
    %10 = vsyncpa %s9, 0
    loop: start=0, step=1, limit=4
    $region2: #{tpu_custom_call.1} parent=1 // loop_pre_header
      _
    $region3: #{tpu_custom_call.1} parent=1 // loop_header
      %s12 = sphi 0, %s16
      %p13 = scmp.ge.s32.totalorder %s12, 4
      %s22 = sphi 0, %s24
      %s25 = sphi 0, %s22
      %s26 = sphi 0, %s25
      %s42 = sphi 0, %s26
      %s46 = sphi 0, %s46
      %s48 = sphi 0, %s46
      %s49 = sphi 0, %s48
      %s63 = sphi 0, %s49
      %s67 = sphi 0, %s67
      %s69 = sphi 0, %s67
      %s70 = sphi 0, %s69
      %s84 = sphi 0, %s70
      %s90 = sphi 0, %s92
      %s93 = sphi 0, %s90
      %s94 = sphi 0, %s93
      %s110 = sphi 0, %s94
    $region4: #{tpu_custom_call.1} parent=1 // loop_header_branch
      %15 = sbr.rel (%p13) target = $region8
    $region5: #{tpu_custom_call.1} parent=1 // loop_body
      %s17 = ssub.s32 %s12, 1
      %s18 = ssub.s32 %s12, 2
      %s19 = sadd.s32 %s12, 1
      %s20 = ssub.s32 %s12, %s19
      %p21 = scmp.eq.s32.totalorder %s20, 0
      %s23 = sadd.s32 %s22, 1
      %s24 = scalar_select %p21, %s22, %s23
      %p27 = pneg %p21
      %p28 = scmp.eq.s32.totalorder %s12, 1
      %p29 = por %p27, %p28
      %p30 = scmp.ne.s32.totalorder %s22, %s25
      %p31 = scmp.eq.s32.totalorder %s12, 0
      %p32 = por %p30, %p31
      %p33 = scmp.ne.s32.totalorder %s22, %s25
      %p34 = scmp.eq.s32.totalorder %s17, 1
      %p35 = por %p33, %p34
      %p36 = scmp.ne.s32.totalorder %s25, %s26
      %p37 = scmp.eq.s32.totalorder %s17, 0
      %p38 = por %p36, %p37
      %p39 = scmp.ne.s32.totalorder %s25, %s26
      %p40 = scmp.eq.s32.totalorder %s18, 1
      %p41 = por %p39, %p40
      %p43 = scmp.ne.s32.totalorder %s26, %s42
      %p44 = scmp.eq.s32.totalorder %s18, 0
      %p45 = por %p43, %p44
      %s47 = sadd.s32 %s46, 1
      %p50 = scmp.eq.s32.totalorder %s12, 1
      %p51 = scmp.ne.s32.totalorder %s46, %s48
      %p52 = scmp.eq.s32.totalorder %s12, 0
      %p53 = por %p51, %p52
      %p54 = scmp.ne.s32.totalorder %s46, %s48
      %p55 = scmp.eq.s32.totalorder %s17, 1
      %p56 = por %p54, %p55
      %p57 = scmp.ne.s32.totalorder %s48, %s49
      %p58 = scmp.eq.s32.totalorder %s17, 0
      %p59 = por %p57, %p58
      %p60 = scmp.ne.s32.totalorder %s48, %s49
      %p61 = scmp.eq.s32.totalorder %s18, 1
      %p62 = por %p60, %p61
      %p64 = scmp.ne.s32.totalorder %s49, %s63
      %p65 = scmp.eq.s32.totalorder %s18, 0
      %p66 = por %p64, %p65
      %s68 = sadd.s32 %s67, 1
      %p71 = scmp.eq.s32.totalorder %s12, 1
      %p72 = scmp.ne.s32.totalorder %s67, %s69
      %p73 = scmp.eq.s32.totalorder %s12, 0
      %p74 = por %p72, %p73
      %p75 = scmp.ne.s32.totalorder %s67, %s69
      %p76 = scmp.eq.s32.totalorder %s17, 1
      %p77 = por %p75, %p76
      %p78 = scmp.ne.s32.totalorder %s69, %s70
      %p79 = scmp.eq.s32.totalorder %s17, 0
      %p80 = por %p78, %p79
      %p81 = scmp.ne.s32.totalorder %s69, %s70
      %p82 = scmp.eq.s32.totalorder %s18, 1
      %p83 = por %p81, %p82
      %p85 = scmp.ne.s32.totalorder %s70, %s84
      %p86 = scmp.eq.s32.totalorder %s18, 0
      %p87 = por %p85, %p86
      %s88 = ssub.s32 %s12, %s19
      %p89 = scmp.eq.s32.totalorder %s88, 0
      %s91 = sadd.s32 %s90, 1
      %s92 = scalar_select %p89, %s90, %s91
      %p95 = pneg %p89
      %p96 = scmp.eq.s32.totalorder %s12, 1
      %p97 = por %p95, %p96
      %p98 = scmp.ne.s32.totalorder %s90, %s93
      %p99 = scmp.eq.s32.totalorder %s12, 0
      %p100 = por %p98, %p99
      %p101 = scmp.ne.s32.totalorder %s90, %s93
      %p102 = scmp.eq.s32.totalorder %s17, 1
      %p103 = por %p101, %p102
      %p104 = scmp.ne.s32.totalorder %s93, %s94
      %p105 = scmp.eq.s32.totalorder %s17, 0
      %p106 = por %p104, %p105
      %p107 = scmp.ne.s32.totalorder %s93, %s94
      %p108 = scmp.eq.s32.totalorder %s18, 1
      %p109 = por %p107, %p108
      %p111 = scmp.ne.s32.totalorder %s94, %s110
      %p112 = scmp.eq.s32.totalorder %s18, 0
      %p113 = por %p111, %p112
      %p114 = scmp.le.s32.totalorder 1, %s12
      %p115 = scmp.lt.s32.totalorder %s12, 3
      %p116 = pnand %p114, %p115
      %p117 = pneg %p116
      // Predicated region
      $region9: #{tpu_custom_call.1} parent=5 // pred_check
        _
      $region10: #{tpu_custom_call.1} parent=5 // pred_check_branch
        %119 = sbr.rel (%p116) target = $region12
      $region11: #{tpu_custom_call.1} parent=5 // pred_region
        %s120 = ssub.s32 %s12, 1
        // Predicated region
        $region13: #{tpu_custom_call.1} parent=11 // pred_check
          %p121 = pneg %p59
        $region14: #{tpu_custom_call.1} parent=11 // pred_check_branch
          %123 = sbr.rel (%p121) target = $region16
        $region15: #{tpu_custom_call.1} parent=11 // pred_region
          _
        $region16: #{tpu_custom_call.1} parent=11 // pred_fallthru
          _
        // Predicated region
        $region17: #{tpu_custom_call.1} parent=11 // pred_check
          %p124 = pneg %p80
        $region18: #{tpu_custom_call.1} parent=11 // pred_check_branch
          %126 = sbr.rel (%p124) target = $region20
        $region19: #{tpu_custom_call.1} parent=11 // pred_region
          _
        $region20: #{tpu_custom_call.1} parent=11 // pred_fallthru
          _
      $region12: #{tpu_custom_call.1} parent=5 // pred_fallthru
        _
      %p127 = scmp.lt.s32.totalorder %s12, 2
      // Predicated region
      $region21: #{tpu_custom_call.1} parent=5 // pred_check
        %p128 = pneg %p127
      $region22: #{tpu_custom_call.1} parent=5 // pred_check_branch
        %130 = sbr.rel (%p128) target = $region24
      $region23: #{tpu_custom_call.1} parent=5 // pred_region
        // Predicated region
        $region25: #{tpu_custom_call.1} parent=23 // pred_check
          %p131 = pneg %p32
        $region26: #{tpu_custom_call.1} parent=23 // pred_check_branch
          %133 = sbr.rel (%p131) target = $region28
        $region27: #{tpu_custom_call.1} parent=23 // pred_region
          %p134 = scmp.lt.s32.totalorder %s12, 1
          %s135 = scalar_select %p134, %s12, 1
          %s136 = smul.addr %s135, 8
          %s137 = scalar_lea.vmem %s0, %s136
        $region28: #{tpu_custom_call.1} parent=23 // pred_fallthru
          _
      $region24: #{tpu_custom_call.1} parent=5 // pred_fallthru
        _
      %p138 = scmp.le.s32.totalorder 1, %s12
      %p139 = scmp.lt.s32.totalorder %s12, 3
      %p140 = pnand %p138, %p139
      %p141 = pneg %p140
      // Predicated region
      $region29: #{tpu_custom_call.1} parent=5 // pred_check
        _
      $region30: #{tpu_custom_call.1} parent=5 // pred_check_branch
        %143 = sbr.rel (%p140) target = $region32
      $region31: #{tpu_custom_call.1} parent=5 // pred_region
        %s144 = ssub.s32 %s12, 1
        %p145 = scmp.lt.s32.totalorder %s17, 1
        %s146 = scalar_select %p145, %s17, 1
        %s147 = smul.addr %s146, 8
        %s148 = scalar_lea.vmem %s0, %s147
        %p149 = pneg %p38
        %p150 = pneg %p35
        %p151 = pneg %p59
        %p152 = pneg %p56
        %p153 = pneg %p80
        %p154 = pneg %p77
        %p155 = pneg %p106
        %p156 = pneg %p103
        %s157 = sand.u32 %s93, 1
        %s158 = scalar_lea.sflag [#allocation3], %s157
        %s159 = sand.u32 %s93, 1
        %s160 = smul.addr %s159, 8
        %s161 = scalar_lea.vmem [#allocation2], %s160
        %p162 = scmp.lt.s32.totalorder %s17, 1
        %s163 = scalar_select %p162, %s17, 1
        %s164 = smul.addr %s163, 8
        %s165 = scalar_lea.vmem %s0, %s164
        %v166 = vld [vmem:[%s165] sm:$0xff]
        %167 = vadd.xlane.f32.xlu0 %v166
        %v168 = vpop.xlane.xlu0 %167
        %v169 = vrot.slane %v168, 4
        %v170 = vadd.f32 %v168, %v169
        %v171 = vrot.slane %v170, 2
        %v172 = vadd.f32 %v170, %v171
        %v173 = vrot.slane %v172, 1
        %v174 = vadd.f32 %v172, %v173
        %v175 = vmul.f32 %v174, 0.0009765625
        %v176 = vsub.f32 %v166, %v175
        %v177 = vmul.f32 %v176, %v176
        %178 = vadd.xlane.f32.xlu0 %v177
        %v179 = vpop.xlane.xlu0 %178
        %v180 = vrot.slane %v179, 4
        %v181 = vadd.f32 %v179, %v180
        %v182 = vrot.slane %v181, 2
        %v183 = vadd.f32 %v181, %v182
        %v184 = vrot.slane %v183, 1
        %v185 = vadd.f32 %v183, %v184
        %v186 = vmul.f32 %v185, 0.0009775171
        %v187 = vrsqrt.pop %v186
        %v188 = vmul.f32 %v186, %v187
        %vm189 = vcmp.eq.f32.partialorder %v186, inf
        %v190 = vsel %vm189, %v186, %v188
        %vm191 = vcmp.eq.f32.partialorder %v186, 0.0
        %v192 = vand.u32 %v186, 2147483648
        %v193 = vsel %vm191, %v192, %v190
        %v194 = vadd.f32 %v193, 1e-05
        %v195 = vrcp.pop %v194
        %v196 = vmul.f32 %v194, %v195
        %v197 = vsub.f32 2.0, %v196
        %v198 = vmul.f32 %v195, %v197
        %v199 = vld [vmem:[%s1] sm:$0xff]
        %v200 = vmul.f32 %v199, %v198
        %v201 = vld [vmem:[%s2] sm:$0xff]
        %v202 = vmul.f32 %v175, %v200
        %v203 = vsub.f32 %v201, %v202
        %205 = vset.pattern.permute.xlu0 0
        %206 = vperm.xlu0 %205, %v200
        %v207 = vpop.permute.xlu0 %206
        %v209 = vmul.f32 %v166, %v207
        %211 = vset.pattern.permute.xlu0 0
        %212 = vperm.xlu0 %211, %v203
        %v213 = vpop.permute.xlu0 %212
        %v215 = vadd.f32 %v209, %v213
        %216 = vst [vmem:[%s161] sm:$0xff] %v215
        %s217 = sand.u32 %s93, 1
        %s218 = scalar_lea.sflag [#allocation3], %s217
        %s219 = sand.u32 %s93, 1
        %s220 = smul.addr %s219, 8
        %s221 = scalar_lea.vmem [#allocation2], %s220
        // Predicated region
        $region33: #{tpu_custom_call.1} parent=31 // pred_check
          %p222 = pneg %p103
        $region34: #{tpu_custom_call.1} parent=31 // pred_check_branch
          %224 = sbr.rel (%p222) target = $region36
        $region35: #{tpu_custom_call.1} parent=31 // pred_region
          %s226 = ssub.s32 128, 128
          %227 = vsyncadd %s218, %s226
          %s228 = smul.addr %s17, 128
          %s229 = scalar_lea.hbm %s3, %s228
          %s231 = sshll.u32 %s221, 4
          %s232 = int_to_ptr.vmem [resolvable:$true] %s231
          %234 = dma.vmem_to_hbm [thread:$0]  %s232, 128, %s229, %s218
        $region36: #{tpu_custom_call.1} parent=31 // pred_fallthru
          _
      $region32: #{tpu_custom_call.1} parent=5 // pred_fallthru
        _
      %p235 = scmp.le.s32.totalorder 2, %s12
      // Predicated region
      $region37: #{tpu_custom_call.1} parent=5 // pred_check
        %p236 = pneg %p235
      $region38: #{tpu_custom_call.1} parent=5 // pred_check_branch
        %238 = sbr.rel (%p236) target = $region40
      $region39: #{tpu_custom_call.1} parent=5 // pred_region
        %s239 = ssub.s32 %s12, 2
        // Predicated region
        $region41: #{tpu_custom_call.1} parent=39 // pred_check
          %p240 = pneg %p109
        $region42: #{tpu_custom_call.1} parent=39 // pred_check_branch
          %242 = sbr.rel (%p240) target = $region44
        $region43: #{tpu_custom_call.1} parent=39 // pred_region
          %s243 = sand.u32 %s94, 1
          %s244 = scalar_lea.sflag [#allocation3], %s243
          %s245 = sand.u32 %s94, 1
          %s246 = smul.addr %s245, 8
          %s247 = scalar_lea.vmem [#allocation2], %s246
          %248 = dma.done %s244, 128
        $region44: #{tpu_custom_call.1} parent=39 // pred_fallthru
          _
      $region40: #{tpu_custom_call.1} parent=5 // pred_fallthru
        _
    $region6: #{tpu_custom_call.1} parent=1 // loop_footer
      %s16 = sadd.s32 1, %s12
    $region7: #{tpu_custom_call.1} parent=1 // loop_footer_branch
      %11 = sbr.rel target = $region3
    $region8: #{tpu_custom_call.1} parent=1 // loop_exit
      _
    %249 = vsyncpa [#allocation3], 1
    %s250 = scalar_lea.sflag [#allocation3], 1
    %251 = vsyncpa %s250, 1

</llo_original>
